<compile_context>
chip_gen: v7x
topology: tpu7x:2x2x1
jax: 0.10.0
libtpu: 0.0.40
codegen_flags: <defaults>
</compile_context>

<pallas_src>
import jax
import jax.numpy as jnp
from jax.experimental import pallas as pl
from jax.experimental.pallas import tpu as pltpu


def _copy_kernel(x_ref, o_ref):
    # Pure pass-through: the reference forward performs no computation.
    o_ref[...] = x_ref[...]


_LANE = 128                       # lane-dense last block dim (full vreg width)
_TARGET_TILE_BYTES = 4 * 1024 * 1024   # ~4 MiB per block buffer


def _sublane_multiple(dtype) -> int:
    """Sublane packing for the dtype: 8 for 4-byte, 16 for 2-byte, 32 for 1-byte."""
    itemsize = jnp.dtype(dtype).itemsize
    return max(8, 32 // max(1, itemsize))


def flexible_matcher_forward(x: jax.Array) -> jax.Array:
    """Pallas implementation of FlexibleMatcher.forward (identity placeholder).

    Returns an array identical to x.
    """
    total = x.size
    itemsize = jnp.dtype(x.dtype).itemsize

    if total == 0 or total % _LANE != 0:
        # Fallback: single full-array block (block == full dims is always legal).
        return pl.pallas_call(
            _copy_kernel,
            out_shape=jax.ShapeDtypeStruct(x.shape, x.dtype),
            input_output_aliases={0: 0},
        )(x)

    # Flatten to a lane-dense (rows, 128) slab — zero-cost layout plumbing.
    rows = total // _LANE
    flat = x.reshape(rows, _LANE)

    sub = _sublane_multiple(x.dtype)
    tile_r = _TARGET_TILE_BYTES // (_LANE * itemsize)
    tile_r = min(tile_r, rows)
    if rows >= sub:
        # Keep the sublane (row) block dim a multiple of the dtype packing.
        tile_r = max(sub, (tile_r // sub) * sub)
    # If rows < sub, tile_r == rows and the block equals the full array dims,
    # which is always a legal block shape.

    grid = (pl.cdiv(rows, tile_r),)

    out = pl.pallas_call(
        _copy_kernel,
        out_shape=jax.ShapeDtypeStruct((rows, _LANE), x.dtype),
        grid=grid,
        in_specs=[pl.BlockSpec((tile_r, _LANE), lambda r: (r, 0))],
        out_specs=pl.BlockSpec((tile_r, _LANE), lambda r: (r, 0)),
        input_output_aliases={0: 0},
        compiler_params=pltpu.CompilerParams(
            dimension_semantics=("parallel",),
            vmem_limit_bytes=48 * 1024 * 1024,
        ),
    )(flat)
    return out.reshape(x.shape)


if __name__ == "__main__":
    key = jax.random.PRNGKey(0)
    batch, seq, hidden = 2, 8, 32
    shape = (batch, seq, hidden)

    x = jax.random.normal(key, shape, dtype=jnp.float32)
    # Regenerate the expected values from the same key so verification does not
    # depend on x's buffer (which may be donated via input_output_aliases).
    expected = jax.random.normal(key, shape, dtype=jnp.float32)

    out = flexible_matcher_forward(x)
    out = jax.block_until_ready(out)

    assert out.shape == shape and out.dtype == jnp.float32
    assert bool(jnp.all(out == expected))

    print("KERNEL_OK")
</pallas_src>

<mosaic_0001>
module attributes {stable_mosaic.version = 11 : i64} {
  func.func @_copy_kernel(%arg0: i32, %arg1: memref<4x128xf32, #tpu.memory_space<vmem>>, %arg2: memref<4x128xf32, #tpu.memory_space<vmem>>) attributes {dimension_semantics = [#tpu.dimension_semantics<parallel>], iteration_bounds = array<i64: 1>, scalar_prefetch = 0 : i64, scratch_operands = 0 : i64, tpu.core_type = #tpu.core_type<tc>, window_params = [{transform_indices = @transform_0, window_bounds = array<i64: 4, 128>}, {transform_indices = @transform_1, window_bounds = array<i64: 4, 128>}]} {
    %c0 = arith.constant 0 : index
    %c0_0 = arith.constant 0 : index
    %0 = vector.load %arg1[%c0, %c0_0] : memref<4x128xf32, #tpu.memory_space<vmem>>, vector<4x128xf32>
    %c0_1 = arith.constant 0 : index
    %c0_2 = arith.constant 0 : index
    %1 = vector.load %arg2[%c0_1, %c0_2] : memref<4x128xf32, #tpu.memory_space<vmem>>, vector<4x128xf32>
    tpu.vector_store %arg2[%c0_1, %c0_2], %0 {strides = array<i32>} : memref<4x128xf32, #tpu.memory_space<vmem>>, vector<4x128xf32>,
    return
  }
  func.func @transform_0(%arg0: i32) -> (i32, i32) {
    %c0_i32 = arith.constant 0 : i32
    %c0_i32_0 = arith.constant 0 : i32
    return %arg0, %c0_i32 : i32, i32
  }
  func.func @transform_1(%arg0: i32) -> (i32, i32) {
    %c0_i32 = arith.constant 0 : i32
    %c0_i32_0 = arith.constant 0 : i32
    return %arg0, %c0_i32 : i32, i32
  }
}

</mosaic_0001>

<llo_original>
// kernel: tpu_custom_call.1
$region0: #{tpu_custom_call.1}
  #allocation0 [shape = 'u32[]', space=smem, size = 0x4, offset = 0x4, fixed_abs, tag = 'smem constant byte address 0x4 - core index']
  #allocation1 [shape = 'u32[144,128]{1,0:T(1,128)}', space=vmem, size = 0x12000, scoped, tag = 'internal scratch']
  %s0 = inlined_call_operand.hbm [shape: f32[4,128], index: 0, kind: input, shape index: {}, may-alias: {0,1}]
  %s1 = inlined_call_operand.hbm [shape: f32[4,128], index: 1, kind: output, shape index: {}, may-alias: {0,1}]
  %s2 = sld [smem:[#allocation0]]
  $region18: #{tpu_custom_call.1} parent=0
    _
  %s4 = ssub.s32 1, %s2
  %s5 = scalar_select 0, %s4, %s2
  $region1: #{tpu_custom_call.1} parent=0
    #allocation2 [shape = 'u8[2048]{0}', space=vmem, size = 0x800, scoped, tag = 'input window, operand 0, single buffered']
    #allocation3 [shape = 's32[1]{0}', space=sflag, size = 0x4, scoped, tag = 'scoped memory for tpu_custom_call.1']
    #allocation4 [shape = 's32[1]{0}', space=sflag, size = 0x4, scoped, tag = 'scoped memory for tpu_custom_call.1']
    #allocation5 [shape = 'u8[2048]{0}', space=vmem, size = 0x800, scoped, tag = 'output window, operand 0, single buffered']
    %6 = vsyncpa [#allocation3], 0
    %7 = vsyncpa [#allocation4], 0
    // Predicated region
    $region2: #{tpu_custom_call.1} parent=1 // pred_check
      _
    $region3: #{tpu_custom_call.1} parent=1 // pred_check_branch
      %9 = sbr.rel (0) target = $region5
    $region4: #{tpu_custom_call.1} parent=1 // pred_region
      %s11 = ssub.s32 64, 64
      %12 = vsyncadd [#allocation3], %s11
      %s14 = sshll.u32 [#allocation2], 4
      %s15 = int_to_ptr.vmem [resolvable:$true] %s14
      %17 = dma.hbm_to_vmem [thread:$0]  %s0, 64, %s15, [#allocation3]
    $region5: #{tpu_custom_call.1} parent=1 // pred_fallthru
      _
    // Predicated region
    $region6: #{tpu_custom_call.1} parent=1 // pred_check
      _
    $region7: #{tpu_custom_call.1} parent=1 // pred_check_branch
      %19 = sbr.rel (0) target = $region9
    $region8: #{tpu_custom_call.1} parent=1 // pred_region
      %20 = dma.done [#allocation3], 64
    $region9: #{tpu_custom_call.1} parent=1 // pred_fallthru
      _
    %v21 = vld [vmem:[#allocation2] sm:$0xf]
    %22 = vst [vmem:[#allocation5] sm:$0xf] %v21
    // Predicated region
    $region10: #{tpu_custom_call.1} parent=1 // pred_check
      _
    $region11: #{tpu_custom_call.1} parent=1 // pred_check_branch
      %24 = sbr.rel (0) target = $region13
    $region12: #{tpu_custom_call.1} parent=1 // pred_region
      %s26 = ssub.s32 64, 64
      %27 = vsyncadd [#allocation4], %s26
      %s29 = sshll.u32 [#allocation5], 4
      %s30 = int_to_ptr.vmem [resolvable:$true] %s29
      %32 = dma.vmem_to_hbm [thread:$0]  %s30, 64, %s1, [#allocation4]
    $region13: #{tpu_custom_call.1} parent=1 // pred_fallthru
      _
    // Predicated region
    $region14: #{tpu_custom_call.1} parent=1 // pred_check
      _
    $region15: #{tpu_custom_call.1} parent=1 // pred_check_branch
      %34 = sbr.rel (0) target = $region17
    $region16: #{tpu_custom_call.1} parent=1 // pred_region
      %35 = dma.done [#allocation4], 64
    $region17: #{tpu_custom_call.1} parent=1 // pred_fallthru
      _
    %36 = vsyncpa [#allocation3], 1
    %37 = vsyncpa [#allocation4], 1

</llo_original>
